<compile_context>
chip_gen: v7x
topology: tpu7x:2x2x1
jax: 0.10.0
libtpu: 0.0.40
codegen_flags: <defaults>
</compile_context>

<pallas_src>
import functools

import jax
import jax.numpy as jnp
from jax import lax
from jax.experimental import pallas as pl
from jax.experimental.pallas import tpu as pltpu

_NEG_BIG = -1e30  # finite stand-in for -inf (avoids exp(-inf - -inf) = NaN)


# --------------------------------------------------------------------------
# Tile-size helpers (respect the (8, 128) BlockSpec constraint).
# --------------------------------------------------------------------------
def _pick_tq(n, target=256):
    """Row tile: multiple of 8 dividing n, <= target, keeping >=2 row tiles
    when possible (so the 'parallel' axis can shard across v7x's 2 cores)."""
    cap = min(target, n)
    if n >= 16:
        cap = min(cap, n // 2)
    t = (cap // 8) * 8
    while t >= 8:
        if n % t == 0:
            return t
        t -= 8
    return n


def _pick_tk(n, target=2048):
    """Column tile: lane-dense multiple of 128 dividing n, <= target."""
    t = (min(target, n) // 128) * 128
    while t >= 128:
        if n % t == 0:
            return t
        t -= 128
    return n  # fall back to the full axis (always a legal block)


def _pick_prologue_tile(n, target=512):
    t = (min(target, n) // 128) * 128
    while t >= 128:
        if n % t == 0:
            return t
        t -= 128
    return n


# --------------------------------------------------------------------------
# Prologue: fused L2-normalize + 1/T query scaling + key transpose.
# --------------------------------------------------------------------------
def _preprocess_kernel(f_ref, q_ref, kt_ref, *, inv_t):
    # F.normalize(x, dim=1): x / max(||x||, 1e-12) == x * rsqrt(max(||x||^2, 1e-24))
    f = f_ref[...].astype(jnp.float32)
    sumsq = jnp.sum(f * f, axis=1, keepdims=True)
    fn = f * lax.rsqrt(jnp.maximum(sumsq, 1e-24))
    q_ref[...] = fn * inv_t        # query path pre-scaled by 1/temperature
    kt_ref[...] = fn.T             # key path transposed once -> lane-dense (D, tk) loads


# --------------------------------------------------------------------------
# Main flash-style loss kernel.
# --------------------------------------------------------------------------
def _infonce_tiled_kernel(q_ref, kt_ref, out_ref, m_sc, l_sc, pos_sc, *,
                          batch_size, tq, tk):
    i = pl.program_id(0)          # row tile (parallel)
    kk = pl.program_id(1)         # column tile (reduction axis, innermost)
    q_start = i * tq
    k_start = kk * tk
    q_end = q_start + tq
    k_end = k_start + tk
    B = batch_size

    @pl.when(kk == 0)
    def _init():
        m_sc[...] = jnp.full_like(m_sc, _NEG_BIG)
        l_sc[...] = jnp.zeros_like(l_sc)
        pos_sc[...] = jnp.zeros_like(pos_sc)

    # (TQ, TK) logits tile on the MXU.  Queries are already scaled by 1/T and
    # keys arrive pre-transposed (D, tk): plain matmul, no rescale, no vxpose.
    logits = jnp.dot(q_ref[...], kt_ref[...], preferred_element_type=jnp.float32)

    # ---- first-positive extraction, gated to the column tiles that can hold
    #      a positive for this row tile (closed-form scalar range checks) ----
    # First positive column (CrossEntropy target 0 in the PyTorch module):
    #   c_pos(r) = r + B  if r <  B
    #            = r % B  if r >= B      (also correct for n_views > 2)
    # part1: rows < B  -> cols [q_start+B, min(q_end,B)+B), contiguous.
    lo1 = q_start + B
    hi1 = jnp.minimum(q_end, B) + B
    part1 = (q_start < B) & (lo1 < k_end) & (k_start < hi1)
    # part2: rows >= B -> cols = r % B, a contiguous range mod B (may wrap).
    lo2 = jnp.maximum(q_start, B)
    n2 = q_end - lo2
    a2 = lo2 % B
    b2 = a2 + n2
    seg1 = (a2 < k_end) & (k_start < jnp.minimum(b2, B))
    seg2 = (b2 > B) & (k_start < b2 - B)
    part2 = (n2 > 0) & (k_start < B) & ((n2 >= B) | seg1 | seg2)
    has_pos = part1 | part2

    @pl.when(has_pos)
    def _pos():
        row_g = lax.broadcasted_iota(jnp.int32, (tq, 1), 0) + q_start
        col_l = lax.broadcasted_iota(jnp.int32, (tq, tk), 1)
        c_pos = jnp.where(row_g < B, row_g + B, row_g % B)          # (TQ, 1)
        pos_hit = col_l == (c_pos - k_start)                         # (TQ, TK)
        pos_sc[...] += jnp.sum(jnp.where(pos_hit, logits, 0.0),
                               axis=1, keepdims=True)

    # ---- online logsumexp over all off-diagonal logits ----
    def _update(lg):
        tile_max = jnp.max(lg, axis=1, keepdims=True)
        m_new = jnp.maximum(m_sc[...], tile_max)
        alpha = jnp.exp(m_sc[...] - m_new)
        p = jnp.exp(lg - m_new)
        l_sc[...] = alpha * l_sc[...] + jnp.sum(p, axis=1, keepdims=True)
        m_sc[...] = m_new

    # Only tiles that intersect the diagonal pay for the diagonal mask.
    has_diag = (q_start < k_end) & (k_start < q_end)

    @pl.when(has_diag)
    def _with_diag():
        row_g = lax.broadcasted_iota(jnp.int32, (tq, 1), 0) + q_start
        col_g = lax.broadcasted_iota(jnp.int32, (tq, tk), 1) + k_start
        _update(jnp.where(col_g == row_g, _NEG_BIG, logits))

    @pl.when(jnp.logical_not(has_diag))
    def _no_diag():
        _update(logits)

    # Finalize this row tile: one partial-loss scalar (mean finished outside).
    @pl.when(kk == pl.num_programs(1) - 1)
    def _finalize():
        lse = m_sc[...] + jnp.log(l_sc[...])            # (TQ, 1)
        per_row = lse - pos_sc[...]                     # positive already /T
        out_ref[0] = jnp.sum(per_row, axis=0, keepdims=True)   # (1, 1)


# --------------------------------------------------------------------------
# Wrapper.
# --------------------------------------------------------------------------
@functools.partial(
    jax.jit,
    static_argnames=("batch_size", "n_views", "temperature", "block_q", "block_k"))
def infonce_loss(features, *, batch_size, n_views, temperature,
                 block_q=None, block_k=None):
    N, D = features.shape
    assert N == batch_size * n_views, (N, batch_size, n_views)
    inv_t = float(1.0 / temperature)

    # ---- prologue: normalize + scale queries + transpose keys, once ----
    tn = _pick_prologue_tile(N)
    q_scaled, k_t = pl.pallas_call(
        functools.partial(_preprocess_kernel, inv_t=inv_t),
        out_shape=(jax.ShapeDtypeStruct((N, D), jnp.float32),
                   jax.ShapeDtypeStruct((D, N), jnp.float32)),
        grid_spec=pltpu.PrefetchScalarGridSpec(
            num_scalar_prefetch=0,
            grid=(N // tn,),
            in_specs=[pl.BlockSpec((tn, D), lambda i: (i, 0))],
            out_specs=(pl.BlockSpec((tn, D), lambda i: (i, 0)),
                       pl.BlockSpec((D, tn), lambda i: (0, i)))),
        compiler_params=pltpu.CompilerParams(dimension_semantics=("parallel",)),
    )(features)

    # ---- main tiled flash-style loss kernel ----
    tq = block_q if block_q else _pick_tq(N)     # row tile (parallel)
    tk = block_k if block_k else _pick_tk(N)     # lane-dense column tile
    assert N % tq == 0 and N % tk == 0, (N, tq, tk)
    assert (tq % 8 == 0) or tq == N, tq
    assert (tk % 128 == 0) or tk == N, tk
    gi, gk = N // tq, N // tk

    kernel = functools.partial(
        _infonce_tiled_kernel, batch_size=int(batch_size), tq=tq, tk=tk)

    # Explicit VMEM budget: ~a few live (tq, tk) f32 temporaries + double-
    # buffered q/k tiles.  >= v5e's 16 MiB default, well under v7x's 64 MiB.
    est = (8 * tq * tk + 4 * (tq + tk) * D + 3 * tq) * 4 + (2 << 20)
    vmem_limit = int(min(max(est, 32 << 20), 48 << 20))

    partials = pl.pallas_call(
        kernel,
        out_shape=jax.ShapeDtypeStruct((gi, 1, 1), jnp.float32),
        grid_spec=pltpu.PrefetchScalarGridSpec(
            num_scalar_prefetch=0,
            grid=(gi, gk),
            in_specs=[pl.BlockSpec((tq, D), lambda i, k: (i, 0)),
                      pl.BlockSpec((D, tk), lambda i, k: (0, k))],
            out_specs=pl.BlockSpec((1, 1, 1), lambda i, k: (i, 0, 0)),
            scratch_shapes=[pltpu.VMEM((tq, 1), jnp.float32),    # running max
                            pltpu.VMEM((tq, 1), jnp.float32),    # running sum
                            pltpu.VMEM((tq, 1), jnp.float32)]),  # positive logit
        compiler_params=pltpu.CompilerParams(
            dimension_semantics=("parallel", "arbitrary"),
            vmem_limit_bytes=vmem_limit),
    )(q_scaled, k_t)

    # Tiny mean over num_row_tiles partial sums, finished outside the kernel.
    return jnp.sum(partials) / jnp.float32(N)


# --------------------------------------------------------------------------
# Pure-JAX reference mirroring the PyTorch module, for sanity checks.
# --------------------------------------------------------------------------
def _infonce_ref(features, *, batch_size, n_views, temperature):
    N = features.shape[0]
    labels = jnp.tile(jnp.arange(batch_size), n_views)
    label_mat = (labels[None, :] == labels[:, None]).astype(jnp.float32)
    fn = features / jnp.maximum(
        jnp.linalg.norm(features, axis=1, keepdims=True), 1e-12)
    sim = fn @ fn.T
    eye = jnp.eye(N, dtype=bool)
    label_mat = label_mat[~eye].reshape(N, -1)
    sim = sim[~eye].reshape(N, -1)
    pos = sim[label_mat.astype(bool)].reshape(N, -1)
    neg = sim[~label_mat.astype(bool)].reshape(N, -1)
    logits = jnp.concatenate([pos, neg], axis=1) / temperature
    lse = jax.scipy.special.logsumexp(logits, axis=1)
    return jnp.mean(lse - logits[:, 0])


if __name__ == "__main__":
    # Shapes implied by the module: features = (n_views * batch_size, feat_dim)
    batch_size, n_views, temperature, feat_dim = 4, 2, 0.5, 32
    key = jax.random.PRNGKey(0)
    features = jax.random.normal(
        key, (n_views * batch_size, feat_dim), dtype=jnp.float32)

    loss = infonce_loss(features, batch_size=batch_size, n_views=n_views,
                        temperature=temperature)
    loss = jax.block_until_ready(loss)
    ref = _infonce_ref(features, batch_size=batch_size, n_views=n_views,
                       temperature=temperature)
    assert jnp.allclose(loss, ref, atol=1e-5, rtol=1e-5), (loss, ref)

    # Multi-tile grid: exercises online logsumexp, diagonal gating and the
    # gated cross-tile positive extraction (n_views = 2).
    bs2, nv2, d2, t2 = 128, 2, 32, 0.1
    feats2 = jax.random.normal(jax.random.PRNGKey(0), (bs2 * nv2, d2),
                               dtype=jnp.float32)
    loss2 = infonce_loss(feats2, batch_size=bs2, n_views=nv2, temperature=t2,
                         block_q=64, block_k=128)
    loss2 = jax.block_until_ready(loss2)
    ref2 = _infonce_ref(feats2, batch_size=bs2, n_views=nv2, temperature=t2)
    assert jnp.allclose(loss2, ref2, atol=2e-4, rtol=1e-4), (loss2, ref2)

    # n_views = 3: exercises the wrapping branch of the positive-column gate.
    bs3, nv3, d3, t3 = 128, 3, 32, 0.2
    feats3 = jax.random.normal(jax.random.PRNGKey(0), (bs3 * nv3, d3),
                               dtype=jnp.float32)
    loss3 = infonce_loss(feats3, batch_size=bs3, n_views=nv3, temperature=t3,
                         block_q=96, block_k=128)
    loss3 = jax.block_until_ready(loss3)
    ref3 = _infonce_ref(feats3, batch_size=bs3, n_views=nv3, temperature=t3)
    assert jnp.allclose(loss3, ref3, atol=2e-4, rtol=1e-4), (loss3, ref3)

    print("KERNEL_OK")
</pallas_src>

<mosaic_0001>
module attributes {stable_mosaic.version = 11 : i64} {
  func.func @_infonce_tiled_kernel(%arg0: i32, %arg1: i32, %arg2: memref<8x32xf32, #tpu.memory_space<vmem>>, %arg3: memref<32x8xf32, #tpu.memory_space<vmem>>, %arg4: memref<1x1x1xf32, #tpu.memory_space<vmem>>, %arg5: memref<8x1xf32, #tpu.memory_space<vmem>>, %arg6: memref<8x1xf32, #tpu.memory_space<vmem>>, %arg7: memref<8x1xf32, #tpu.memory_space<vmem>>) attributes {dimension_semantics = [#tpu.dimension_semantics<parallel>, #tpu.dimension_semantics<arbitrary>], iteration_bounds = array<i64: 1, 1>, scalar_prefetch = 0 : i64, scratch_operands = 3 : i64, tpu.core_type = #tpu.core_type<tc>, window_params = [{transform_indices = @transform_0, window_bounds = array<i64: 8, 32>}, {transform_indices = @transform_1, window_bounds = array<i64: 32, 8>}, {transform_indices = @transform_2, window_bounds = array<i64: 1, 1, 1>}]} {
    %c8_i32 = arith.constant 8 : i32
    %0 = arith.muli %arg0, %c8_i32 : i32
    %c8_i32_0 = arith.constant 8 : i32
    %1 = arith.muli %arg1, %c8_i32_0 : i32
    %c8_i32_1 = arith.constant 8 : i32
    %2 = arith.addi %0, %c8_i32_1 : i32
    %c8_i32_2 = arith.constant 8 : i32
    %3 = arith.addi %1, %c8_i32_2 : i32
    %c0_i32 = arith.constant 0 : i32
    %4 = arith.cmpi eq, %arg1, %c0_i32 : i32
    %5 = arith.extui %4 : i1 to i32
    %c0_i32_3 = arith.constant 0 : i32
    %6 = arith.cmpi ne, %5, %c0_i32_3 : i32
    scf.if %6 {
      %cst_27 = arith.constant -1.000000e+30 : f32
      %60 = vector.broadcast %cst_27 : f32 to vector<8x1xf32>
      %c0_28 = arith.constant 0 : index
      %c0_29 = arith.constant 0 : index
      %61 = vector.load %arg5[%c0_28, %c0_29] : memref<8x1xf32, #tpu.memory_space<vmem>>, vector<8x1xf32>
      tpu.vector_store %arg5[%c0_28, %c0_29], %60 {strides = array<i32>} : memref<8x1xf32, #tpu.memory_space<vmem>>, vector<8x1xf32>,
      %cst_30 = arith.constant 0.000000e+00 : f32
      %62 = vector.broadcast %cst_30 : f32 to vector<8x1xf32>
      %c0_31 = arith.constant 0 : index
      %c0_32 = arith.constant 0 : index
      %63 = vector.load %arg6[%c0_31, %c0_32] : memref<8x1xf32, #tpu.memory_space<vmem>>, vector<8x1xf32>
      tpu.vector_store %arg6[%c0_31, %c0_32], %62 {strides = array<i32>} : memref<8x1xf32, #tpu.memory_space<vmem>>, vector<8x1xf32>,
      %cst_33 = arith.constant 0.000000e+00 : f32
      %64 = vector.broadcast %cst_33 : f32 to vector<8x1xf32>
      %c0_34 = arith.constant 0 : index
      %c0_35 = arith.constant 0 : index
      %65 = vector.load %arg7[%c0_34, %c0_35] : memref<8x1xf32, #tpu.memory_space<vmem>>, vector<8x1xf32>
      tpu.vector_store %arg7[%c0_34, %c0_35], %64 {strides = array<i32>} : memref<8x1xf32, #tpu.memory_space<vmem>>, vector<8x1xf32>,
    } else {
    }
    %c0 = arith.constant 0 : index
    %c0_4 = arith.constant 0 : index
    %7 = vector.load %arg2[%c0, %c0_4] : memref<8x32xf32, #tpu.memory_space<vmem>>, vector<8x32xf32>
    %c0_5 = arith.constant 0 : index
    %c0_6 = arith.constant 0 : index
    %8 = vector.load %arg3[%c0_5, %c0_6] : memref<32x8xf32, #tpu.memory_space<vmem>>, vector<32x8xf32>
    %cst = arith.constant dense<0.000000e+00> : vector<8x8xf32>
    %9 = tpu.matmul %7, %8, %cst {dimension_numbers = #tpu.dot_dimension_numbers<[1], [0], [0], [1], [0, 0, 1, 1], [], []>} : vector<8x32xf32>, vector<32x8xf32>, vector<8x8xf32> -> vector<8x8xf32>
    %c4_i32 = arith.constant 4 : i32
    %10 = arith.addi %0, %c4_i32 : i32
    %c4_i32_7 = arith.constant 4 : i32
    %11 = arith.minsi %2, %c4_i32_7 : i32
    %c4_i32_8 = arith.constant 4 : i32
    %12 = arith.addi %11, %c4_i32_8 : i32
    %c4_i32_9 = arith.constant 4 : i32
    %13 = arith.cmpi slt, %0, %c4_i32_9 : i32
    %14 = arith.cmpi slt, %10, %3 : i32
    %15 = arith.andi %13, %14 : i1
    %16 = arith.cmpi slt, %1, %12 : i32
    %17 = arith.andi %15, %16 : i1
    %c4_i32_10 = arith.constant 4 : i32
    %18 = arith.maxsi %0, %c4_i32_10 : i32
    %19 = arith.subi %2, %18 : i32
    %c4_i32_11 = arith.constant 4 : i32
    %c0_i32_12 = arith.constant 0 : i32
    %20 = arith.cmpi eq, %c4_i32_11, %c0_i32_12 : i32
    %c1_i32 = arith.constant 1 : i32
    %21 = arith.select %20, %c1_i32, %c4_i32_11 : i32
    %22 = arith.remsi %18, %21 : i32
    %c0_i32_13 = arith.constant 0 : i32
    %23 = arith.cmpi ne, %22, %c0_i32_13 : i32
    %c0_i32_14 = arith.constant 0 : i32
    %24 = arith.cmpi slt, %22, %c0_i32_14 : i32
    %c0_i32_15 = arith.constant 0 : i32
    %25 = arith.cmpi slt, %21, %c0_i32_15 : i32
    %26 = arith.xori %24, %25 : i1
    %27 = arith.andi %26, %23 : i1
    %28 = arith.addi %22, %21 : i32
    %29 = arith.select %27, %28, %22 : i32
    %30 = arith.addi %29, %19 : i32
    %31 = arith.cmpi slt, %29, %3 : i32
    %c4_i32_16 = arith.constant 4 : i32
    %32 = arith.minsi %30, %c4_i32_16 : i32
    %33 = arith.cmpi slt, %1, %32 : i32
    %34 = arith.andi %31, %33 : i1
    %c4_i32_17 = arith.constant 4 : i32
    %35 = arith.cmpi sgt, %30, %c4_i32_17 : i32
    %c4_i32_18 = arith.constant 4 : i32
    %36 = arith.subi %30, %c4_i32_18 : i32
    %37 = arith.cmpi slt, %1, %36 : i32
    %38 = arith.andi %35, %37 : i1
    %c0_i32_19 = arith.constant 0 : i32
    %39 = arith.cmpi sgt, %19, %c0_i32_19 : i32
    %c4_i32_20 = arith.constant 4 : i32
    %40 = arith.cmpi slt, %1, %c4_i32_20 : i32
    %41 = arith.andi %39, %40 : i1
    %c4_i32_21 = arith.constant 4 : i32
    %42 = arith.cmpi sge, %19, %c4_i32_21 : i32
    %43 = arith.ori %42, %34 : i1
    %44 = arith.ori %43, %38 : i1
    %45 = arith.andi %41, %44 : i1
    %46 = arith.ori %17, %45 : i1
    %47 = arith.extui %46 : i1 to i32
    %c0_i32_22 = arith.constant 0 : i32
    %48 = arith.cmpi ne, %47, %c0_i32_22 : i32
    scf.if %48 {
      %60 = tpu.iota {dimensions = array<i32: 0>} : vector<8x1xi32>
      %61 = vector.broadcast %0 : i32 to vector<8x1xi32>
      %62 = arith.addi %60, %61 : vector<8x1xi32>
      %63 = tpu.iota {dimensions = array<i32: 1>} : vector<8x8xi32>
      %c4_i32_27 = arith.constant 4 : i32
      %64 = vector.broadcast %c4_i32_27 : i32 to vector<8x1xi32>
      %65 = arith.cmpi slt, %62, %64 : vector<8x1xi32>
      %c4_i32_28 = arith.constant 4 : i32
      %66 = vector.broadcast %c4_i32_28 : i32 to vector<8x1xi32>
      %67 = arith.addi %62, %66 : vector<8x1xi32>
      %c4_i32_29 = arith.constant 4 : i32
      %c0_i32_30 = arith.constant 0 : i32
      %68 = arith.cmpi eq, %c4_i32_29, %c0_i32_30 : i32
      %c1_i32_31 = arith.constant 1 : i32
      %69 = arith.select %68, %c1_i32_31, %c4_i32_29 : i32
      %70 = vector.broadcast %69 : i32 to vector<8x1xi32>
      %71 = arith.remsi %62, %70 : vector<8x1xi32>
      %c0_i32_32 = arith.constant 0 : i32
      %72 = vector.broadcast %c0_i32_32 : i32 to vector<8x1xi32>
      %73 = arith.cmpi ne, %71, %72 : vector<8x1xi32>
      %c0_i32_33 = arith.constant 0 : i32
      %74 = vector.broadcast %c0_i32_33 : i32 to vector<8x1xi32>
      %75 = arith.cmpi slt, %71, %74 : vector<8x1xi32>
      %c0_i32_34 = arith.constant 0 : i32
      %76 = arith.cmpi slt, %69, %c0_i32_34 : i32
      %77 = vector.broadcast %76 : i1 to vector<8x1xi1>
      %78 = vector.broadcast %77 : vector<8x1xi1> to vector<8x1xi1>
      %79 = arith.xori %75, %78 : vector<8x1xi1>
      %80 = arith.andi %79, %73 : vector<8x1xi1>
      %81 = vector.broadcast %69 : i32 to vector<8x1xi32>
      %82 = arith.addi %71, %81 : vector<8x1xi32>
      %83 = arith.select %80, %82, %71 : vector<8x1xi1>, vector<8x1xi32>
      %84 = arith.select %65, %67, %83 : vector<8x1xi1>, vector<8x1xi32>
      %85 = vector.broadcast %1 : i32 to vector<8x1xi32>
      %86 = arith.subi %84, %85 : vector<8x1xi32>
      %87 = vector.broadcast %86 : vector<8x1xi32> to vector<8x8xi32>
      %88 = arith.cmpi eq, %63, %87 : vector<8x8xi32>
      %c0_35 = arith.constant 0 : index
      %c0_36 = arith.constant 0 : index
      %89 = vector.load %arg7[%c0_35, %c0_36] : memref<8x1xf32, #tpu.memory_space<vmem>>, vector<8x1xf32>
      %cst_37 = arith.constant 0.000000e+00 : f32
      %90 = vector.broadcast %cst_37 : f32 to vector<8x8xf32>
      %91 = arith.select %88, %9, %90 : vector<8x8xi1>, vector<8x8xf32>
      %cst_38 = arith.constant dense<0.000000e+00> : vector<8xf32>
      %92 = vector.multi_reduction <add>, %91, %cst_38 [1] : vector<8x8xf32> to vector<8xf32>
      %93 = vector.shape_cast %92 : vector<8xf32> to vector<8x1xf32>
      %94 = arith.addf %89, %93 : vector<8x1xf32>
      %c0_39 = arith.constant 0 : index
      %c0_40 = arith.constant 0 : index
      %95 = vector.load %arg7[%c0_39, %c0_40] : memref<8x1xf32, #tpu.memory_space<vmem>>, vector<8x1xf32>
      tpu.vector_store %arg7[%c0_39, %c0_40], %94 {strides = array<i32>} : memref<8x1xf32, #tpu.memory_space<vmem>>, vector<8x1xf32>,
    } else {
    }
    %49 = arith.cmpi slt, %0, %3 : i32
    %50 = arith.cmpi slt, %1, %2 : i32
    %51 = arith.andi %49, %50 : i1
    %52 = arith.extui %51 : i1 to i32
    %c0_i32_23 = arith.constant 0 : i32
    %53 = arith.cmpi ne, %52, %c0_i32_23 : i32
    scf.if %53 {
      %60 = tpu.iota {dimensions = array<i32: 0>} : vector<8x1xi32>
      %61 = vector.broadcast %0 : i32 to vector<8x1xi32>
      %62 = arith.addi %60, %61 : vector<8x1xi32>
      %63 = tpu.iota {dimensions = array<i32: 1>} : vector<8x8xi32>
      %64 = vector.broadcast %1 : i32 to vector<8x8xi32>
      %65 = arith.addi %63, %64 : vector<8x8xi32>
      %66 = vector.broadcast %62 : vector<8x1xi32> to vector<8x8xi32>
      %67 = arith.cmpi eq, %65, %66 : vector<8x8xi32>
      %cst_27 = arith.constant -1.000000e+30 : f32
      %68 = vector.broadcast %cst_27 : f32 to vector<8x8xf32>
      %69 = arith.select %67, %68, %9 : vector<8x8xi1>, vector<8x8xf32>
      %cst_28 = arith.constant dense<0xFF800000> : vector<8xf32>
      %70 = vector.multi_reduction <maximumf>, %69, %cst_28 [1] : vector<8x8xf32> to vector<8xf32>
      %71 = vector.shape_cast %70 : vector<8xf32> to vector<8x1xf32>
      %c0_29 = arith.constant 0 : index
      %c0_30 = arith.constant 0 : index
      %72 = vector.load %arg5[%c0_29, %c0_30] : memref<8x1xf32, #tpu.memory_space<vmem>>, vector<8x1xf32>
      %73 = arith.maximumf %72, %71 : vector<8x1xf32>
      %c0_31 = arith.constant 0 : index
      %c0_32 = arith.constant 0 : index
      %74 = vector.load %arg5[%c0_31, %c0_32] : memref<8x1xf32, #tpu.memory_space<vmem>>, vector<8x1xf32>
      %75 = arith.subf %74, %73 : vector<8x1xf32>
      %76 = math.exp %75 : vector<8x1xf32>
      %77 = vector.broadcast %73 : vector<8x1xf32> to vector<8x8xf32>
      %78 = arith.subf %69, %77 : vector<8x8xf32>
      %79 = math.exp %78 : vector<8x8xf32>
      %c0_33 = arith.constant 0 : index
      %c0_34 = arith.constant 0 : index
      %80 = vector.load %arg6[%c0_33, %c0_34] : memref<8x1xf32, #tpu.memory_space<vmem>>, vector<8x1xf32>
      %81 = arith.mulf %76, %80 : vector<8x1xf32>
      %cst_35 = arith.constant dense<0.000000e+00> : vector<8xf32>
      %82 = vector.multi_reduction <add>, %79, %cst_35 [1] : vector<8x8xf32> to vector<8xf32>
      %83 = vector.shape_cast %82 : vector<8xf32> to vector<8x1xf32>
      %84 = arith.addf %81, %83 : vector<8x1xf32>
      %c0_36 = arith.constant 0 : index
      %c0_37 = arith.constant 0 : index
      %85 = vector.load %arg6[%c0_36, %c0_37] : memref<8x1xf32, #tpu.memory_space<vmem>>, vector<8x1xf32>
      tpu.vector_store %arg6[%c0_36, %c0_37], %84 {strides = array<i32>} : memref<8x1xf32, #tpu.memory_space<vmem>>, vector<8x1xf32>,
      %c0_38 = arith.constant 0 : index
      %c0_39 = arith.constant 0 : index
      %86 = vector.load %arg5[%c0_38, %c0_39] : memref<8x1xf32, #tpu.memory_space<vmem>>, vector<8x1xf32>
      tpu.vector_store %arg5[%c0_38, %c0_39], %73 {strides = array<i32>} : memref<8x1xf32, #tpu.memory_space<vmem>>, vector<8x1xf32>,
    } else {
    }
    %true = arith.constant true
    %54 = arith.xori %51, %true : i1
    %55 = arith.extui %54 : i1 to i32
    %c0_i32_24 = arith.constant 0 : i32
    %56 = arith.cmpi ne, %55, %c0_i32_24 : i32
    scf.if %56 {
      %cst_27 = arith.constant dense<0xFF800000> : vector<8xf32>
      %60 = vector.multi_reduction <maximumf>, %9, %cst_27 [1] : vector<8x8xf32> to vector<8xf32>
      %61 = vector.shape_cast %60 : vector<8xf32> to vector<8x1xf32>
      %c0_28 = arith.constant 0 : index
      %c0_29 = arith.constant 0 : index
      %62 = vector.load %arg5[%c0_28, %c0_29] : memref<8x1xf32, #tpu.memory_space<vmem>>, vector<8x1xf32>
      %63 = arith.maximumf %62, %61 : vector<8x1xf32>
      %c0_30 = arith.constant 0 : index
      %c0_31 = arith.constant 0 : index
      %64 = vector.load %arg5[%c0_30, %c0_31] : memref<8x1xf32, #tpu.memory_space<vmem>>, vector<8x1xf32>
      %65 = arith.subf %64, %63 : vector<8x1xf32>
      %66 = math.exp %65 : vector<8x1xf32>
      %67 = vector.broadcast %63 : vector<8x1xf32> to vector<8x8xf32>
      %68 = arith.subf %9, %67 : vector<8x8xf32>
      %69 = math.exp %68 : vector<8x8xf32>
      %c0_32 = arith.constant 0 : index
      %c0_33 = arith.constant 0 : index
      %70 = vector.load %arg6[%c0_32, %c0_33] : memref<8x1xf32, #tpu.memory_space<vmem>>, vector<8x1xf32>
      %71 = arith.mulf %66, %70 : vector<8x1xf32>
      %cst_34 = arith.constant dense<0.000000e+00> : vector<8xf32>
      %72 = vector.multi_reduction <add>, %69, %cst_34 [1] : vector<8x8xf32> to vector<8xf32>
      %73 = vector.shape_cast %72 : vector<8xf32> to vector<8x1xf32>
      %74 = arith.addf %71, %73 : vector<8x1xf32>
      %c0_35 = arith.constant 0 : index
      %c0_36 = arith.constant 0 : index
      %75 = vector.load %arg6[%c0_35, %c0_36] : memref<8x1xf32, #tpu.memory_space<vmem>>, vector<8x1xf32>
      tpu.vector_store %arg6[%c0_35, %c0_36], %74 {strides = array<i32>} : memref<8x1xf32, #tpu.memory_space<vmem>>, vector<8x1xf32>,
      %c0_37 = arith.constant 0 : index
      %c0_38 = arith.constant 0 : index
      %76 = vector.load %arg5[%c0_37, %c0_38] : memref<8x1xf32, #tpu.memory_space<vmem>>, vector<8x1xf32>
      tpu.vector_store %arg5[%c0_37, %c0_38], %63 {strides = array<i32>} : memref<8x1xf32, #tpu.memory_space<vmem>>, vector<8x1xf32>,
    } else {
    }
    %c0_i32_25 = arith.constant 0 : i32
    %57 = arith.cmpi eq, %arg1, %c0_i32_25 : i32
    %58 = arith.extui %57 : i1 to i32
    %c0_i32_26 = arith.constant 0 : i32
    %59 = arith.cmpi ne, %58, %c0_i32_26 : i32
    scf.if %59 {
      %c0_27 = arith.constant 0 : index
      %c0_28 = arith.constant 0 : index
      %60 = vector.load %arg5[%c0_27, %c0_28] : memref<8x1xf32, #tpu.memory_space<vmem>>, vector<8x1xf32>
      %c0_29 = arith.constant 0 : index
      %c0_30 = arith.constant 0 : index
      %61 = vector.load %arg6[%c0_29, %c0_30] : memref<8x1xf32, #tpu.memory_space<vmem>>, vector<8x1xf32>
      %62 = math.log %61 : vector<8x1xf32>
      %63 = arith.addf %60, %62 : vector<8x1xf32>
      %c0_31 = arith.constant 0 : index
      %c0_32 = arith.constant 0 : index
      %64 = vector.load %arg7[%c0_31, %c0_32] : memref<8x1xf32, #tpu.memory_space<vmem>>, vector<8x1xf32>
      %65 = arith.subf %63, %64 : vector<8x1xf32>
      %cst_33 = arith.constant dense<0.000000e+00> : vector<1xf32>
      %66 = vector.multi_reduction <add>, %65, %cst_33 [0] : vector<8x1xf32> to vector<1xf32>
      %67 = vector.shape_cast %66 : vector<1xf32> to vector<1x1xf32>
      %c0_34 = arith.constant 0 : index
      %c0_35 = arith.constant 0 : index
      %c0_36 = arith.constant 0 : index
      %68 = vector.load %arg4[%c0_34, %c0_35, %c0_36] : memref<1x1x1xf32, #tpu.memory_space<vmem>>, vector<1x1x1xf32>
      %69 = vector.shape_cast %68 : vector<1x1x1xf32> to vector<1x1xf32>
      %70 = vector.shape_cast %67 : vector<1x1xf32> to vector<1x1x1xf32>
      tpu.vector_store %arg4[%c0_34, %c0_35, %c0_36], %70 {strides = array<i32>} : memref<1x1x1xf32, #tpu.memory_space<vmem>>, vector<1x1x1xf32>,
    } else {
    }
    return
  }
  func.func @transform_0(%arg0: i32, %arg1: i32) -> (i32, i32) {
    %c0_i32 = arith.constant 0 : i32
    %c0_i32_0 = arith.constant 0 : i32
    return %arg0, %c0_i32 : i32, i32
  }
  func.func @transform_1(%arg0: i32, %arg1: i32) -> (i32, i32) {
    %c0_i32 = arith.constant 0 : i32
    %c0_i32_0 = arith.constant 0 : i32
    return %c0_i32, %arg1 : i32, i32
  }
  func.func @transform_2(%arg0: i32, %arg1: i32) -> (i32, i32, i32) {
    %c0_i32 = arith.constant 0 : i32
    %c0_i32_0 = arith.constant 0 : i32
    %c0_i32_1 = arith.constant 0 : i32
    return %arg0, %c0_i32, %c0_i32_0 : i32, i32, i32
  }
}

module attributes {stable_mosaic.version = 11 : i64} {
  func.func @_preprocess_kernel(%arg0: i32, %arg1: memref<8x32xf32, #tpu.memory_space<vmem>>, %arg2: memref<8x32xf32, #tpu.memory_space<vmem>>, %arg3: memref<32x8xf32, #tpu.memory_space<vmem>>) attributes {dimension_semantics = [#tpu.dimension_semantics<parallel>], iteration_bounds = array<i64: 1>, scalar_prefetch = 0 : i64, scratch_operands = 0 : i64, tpu.core_type = #tpu.core_type<tc>, window_params = [{transform_indices = @transform_0, window_bounds = array<i64: 8, 32>}, {transform_indices = @transform_1, window_bounds = array<i64: 8, 32>}, {transform_indices = @transform_2, window_bounds = array<i64: 32, 8>}]} {
    %c0 = arith.constant 0 : index
    %c0_0 = arith.constant 0 : index
    %0 = vector.load %arg1[%c0, %c0_0] : memref<8x32xf32, #tpu.memory_space<vmem>>, vector<8x32xf32>
    %1 = arith.mulf %0, %0 : vector<8x32xf32>
    %cst = arith.constant dense<0.000000e+00> : vector<8xf32>
    %2 = vector.multi_reduction <add>, %1, %cst [1] : vector<8x32xf32> to vector<8xf32>
    %3 = vector.shape_cast %2 : vector<8xf32> to vector<8x1xf32>
    %cst_1 = arith.constant 1.000000e-24 : f32
    %4 = vector.broadcast %cst_1 : f32 to vector<8x1xf32>
    %5 = arith.maximumf %3, %4 : vector<8x1xf32>
    %6 = math.rsqrt %5 : vector<8x1xf32>
    %7 = vector.broadcast %6 : vector<8x1xf32> to vector<8x32xf32>
    %8 = arith.mulf %0, %7 : vector<8x32xf32>
    %cst_2 = arith.constant 2.000000e+00 : f32
    %9 = vector.broadcast %cst_2 : f32 to vector<8x32xf32>
    %10 = arith.mulf %8, %9 : vector<8x32xf32>
    %c0_3 = arith.constant 0 : index
    %c0_4 = arith.constant 0 : index
    %11 = vector.load %arg2[%c0_3, %c0_4] : memref<8x32xf32, #tpu.memory_space<vmem>>, vector<8x32xf32>
    tpu.vector_store %arg2[%c0_3, %c0_4], %10 {strides = array<i32>} : memref<8x32xf32, #tpu.memory_space<vmem>>, vector<8x32xf32>,
    %12 = tpu.transpose %8, [1, 0] : vector<8x32xf32> -> vector<32x8xf32>
    %c0_5 = arith.constant 0 : index
    %c0_6 = arith.constant 0 : index
    %13 = vector.load %arg3[%c0_5, %c0_6] : memref<32x8xf32, #tpu.memory_space<vmem>>, vector<32x8xf32>
    tpu.vector_store %arg3[%c0_5, %c0_6], %12 {strides = array<i32>} : memref<32x8xf32, #tpu.memory_space<vmem>>, vector<32x8xf32>,
    return
  }
  func.func @transform_0(%arg0: i32) -> (i32, i32) {
    %c0_i32 = arith.constant 0 : i32
    %c0_i32_0 = arith.constant 0 : i32
    return %arg0, %c0_i32 : i32, i32
  }
  func.func @transform_1(%arg0: i32) -> (i32, i32) {
    %c0_i32 = arith.constant 0 : i32
    %c0_i32_0 = arith.constant 0 : i32
    return %arg0, %c0_i32 : i32, i32
  }
  func.func @transform_2(%arg0: i32) -> (i32, i32) {
    %c0_i32 = arith.constant 0 : i32
    %c0_i32_0 = arith.constant 0 : i32
    return %c0_i32, %arg0 : i32, i32
  }
}

</mosaic_0001>

<llo_original>
// kernel: infonce_loss.2
$region0: #{infonce_loss.2}
  #allocation0 [shape = 'u32[]', space=smem, size = 0x4, offset = 0x4, fixed_abs, tag = 'smem constant byte address 0x4 - core index']
  #allocation1 [shape = 'u32[144,128]{1,0:T(1,128)}', space=vmem, size = 0x12000, scoped, tag = 'internal scratch']
  %s0 = inlined_call_operand.hbm [shape: f32[8,32], index: 0, kind: input, shape index: {}]
  %s1 = inlined_call_operand.vmem [shape: f32[8,32], index: 1, kind: output, shape index: {0}]
  %s2 = inlined_call_operand.vmem [shape: f32[32,8], index: 2, kind: output, shape index: {1}]
  %3 = xla_tuple %s1, %s2
  %s4 = sld [smem:[#allocation0]]
  $region26: #{infonce_loss.2} parent=0
    _
  %s6 = ssub.s32 1, %s4
  %s7 = scalar_select 0, %s6, %s4
  $region1: #{infonce_loss.2} parent=0
    #allocation2 [shape = 'u8[4096]{0}', space=vmem, size = 0x1000, scoped, tag = 'input window, operand 0, single buffered']
    #allocation3 [shape = 's32[1]{0}', space=sflag, size = 0x4, scoped, tag = 'scoped memory for infonce_loss.2']
    %8 = vsyncpa [#allocation3], 0
    // Predicated region
    $region2: #{infonce_loss.2} parent=1 // pred_check
      _
    $region3: #{infonce_loss.2} parent=1 // pred_check_branch
      %10 = sbr.rel (0) target = $region5
    $region4: #{infonce_loss.2} parent=1 // pred_region
      %s12 = ssub.s32 128, 128
      %13 = vsyncadd [#allocation3], %s12
      %s15 = sshll.u32 [#allocation2], 4
      %s16 = int_to_ptr.vmem [resolvable:$true] %s15
      %18 = dma.hbm_to_vmem [thread:$0]  %s0, 128, %s16, [#allocation3]
    $region5: #{infonce_loss.2} parent=1 // pred_fallthru
      _
    // Predicated region
    $region6: #{infonce_loss.2} parent=1 // pred_check
      _
    $region7: #{infonce_loss.2} parent=1 // pred_check_branch
      %20 = sbr.rel (0) target = $region9
    $region8: #{infonce_loss.2} parent=1 // pred_region
      %21 = dma.done [#allocation3], 128
    $region9: #{infonce_loss.2} parent=1 // pred_fallthru
      _
    %v22 = vld [vmem:[#allocation2] sm:$0xff]
    %v23 = vmul.f32 %v22, %v22
    %vm24 = vcmask 261120
    %v25 = vsel %vm24, %v23, 0.0
    %26 = vadd.xlane.f32.xlu0 %v25
    %v27 = vpop.xlane.xlu0 %26
    %v28 = vmax.f32 %v27, 1e-24
    %v29 = vrsqrt.pop %v28
    %v30 = vmul.f32 %v22, %v29
    %v31 = vmul.f32 %v30, 2.0
    %32 = vst.msk [vmem:[%s1] sm:$0xff] %vm24, %v31
    %33 = vxpose.xlu0.b32.start [1/16] %v30, 128
    %34 = vxpose.xlu0.b32.cont [2/16] 0.0, 128
    %35 = vxpose.xlu0.b32.cont [3/16] 0.0, 128
    %36 = vxpose.xlu0.b32.cont [4/16] 0.0, 128
    %37 = vxpose.xlu0.b32.cont [5/16] 0.0, 128
    %38 = vxpose.xlu0.b32.cont [6/16] 0.0, 128
    %39 = vxpose.xlu0.b32.cont [7/16] 0.0, 128
    %40 = vxpose.xlu0.b32.cont [8/16] 0.0, 128
    %41 = vxpose.xlu0.b32.cont [9/16] 0.0, 128
    %42 = vxpose.xlu0.b32.cont [10/16] 0.0, 128
    %43 = vxpose.xlu0.b32.cont [11/16] 0.0, 128
    %44 = vxpose.xlu0.b32.cont [12/16] 0.0, 128
    %45 = vxpose.xlu0.b32.cont [13/16] 0.0, 128
    %46 = vxpose.xlu0.b32.cont [14/16] 0.0, 128
    %47 = vxpose.xlu0.b32.cont [15/16] 0.0, 128
    %48 = vxpose.xlu0.b32.end [16/16] 0.0, 128
    %v49 = vpop.trf.xlu0
    %v50 = vpop.trf.xlu0
    %v51 = vpop.trf.xlu0
    %v52 = vpop.trf.xlu0
    %v53 = vpop.trf.xlu0
    %v54 = vpop.trf.xlu0
    %v55 = vpop.trf.xlu0
    %v56 = vpop.trf.xlu0
    %v57 = vpop.trf.xlu0
    %v58 = vpop.trf.xlu0
    %v59 = vpop.trf.xlu0
    %v60 = vpop.trf.xlu0
    %v61 = vpop.trf.xlu0
    %v62 = vpop.trf.xlu0
    %v63 = vpop.trf.xlu0
    %v64 = vpop.trf.xlu0
    %vm65 = vcmask 64512
    %66 = vst.msk [vmem:[%s2] sm:$0xff] %vm65, %v49
    %67 = vst.msk [vmem:[%s2 + $0x8] sm:$0xff] %vm65, %v50
    %68 = vst.msk [vmem:[%s2 + $0x10] sm:$0xff] %vm65, %v51
    %69 = vst.msk [vmem:[%s2 + $0x18] sm:$0xff] %vm65, %v52
    // Predicated region
    $region10: #{infonce_loss.2} parent=1 // pred_check
      _
    $region11: #{infonce_loss.2} parent=1 // pred_check_branch
      %71 = sbr.rel (0) target = $region13
    $region12: #{infonce_loss.2} parent=1 // pred_region
      _
    $region13: #{infonce_loss.2} parent=1 // pred_fallthru
      _
    // Predicated region
    $region14: #{infonce_loss.2} parent=1 // pred_check
      _
    $region15: #{infonce_loss.2} parent=1 // pred_check_branch
      %73 = sbr.rel (0) target = $region17
    $region16: #{infonce_loss.2} parent=1 // pred_region
      _
    $region17: #{infonce_loss.2} parent=1 // pred_fallthru
      _
    // Predicated region
    $region18: #{infonce_loss.2} parent=1 // pred_check
      _
    $region19: #{infonce_loss.2} parent=1 // pred_check_branch
      %75 = sbr.rel (0) target = $region21
    $region20: #{infonce_loss.2} parent=1 // pred_region
      _
    $region21: #{infonce_loss.2} parent=1 // pred_fallthru
      _
    // Predicated region
    $region22: #{infonce_loss.2} parent=1 // pred_check
      _
    $region23: #{infonce_loss.2} parent=1 // pred_check_branch
      %77 = sbr.rel (0) target = $region25
    $region24: #{infonce_loss.2} parent=1 // pred_region
      _
    $region25: #{infonce_loss.2} parent=1 // pred_fallthru
      _
    %78 = vsyncpa [#allocation3], 1

// kernel: infonce_loss.3
$region0: #{infonce_loss.3}
  #allocation0 [shape = 'u32[]', space=smem, size = 0x4, offset = 0x4, fixed_abs, tag = 'smem constant byte address 0x4 - core index']
  #allocation1 [shape = 'u32[144,128]{1,0:T(1,128)}', space=vmem, size = 0x12000, scoped, tag = 'internal scratch']
  #allocation2 [shape = 'f32[8,1]{1,0:T(8,128)}', space=vmem, size = 0x1000, scoped, tag = 'scratch operand']
  #allocation3 [shape = 'f32[8,1]{1,0:T(8,128)}', space=vmem, size = 0x1000, scoped, tag = 'scratch operand']
  #allocation4 [shape = 'f32[8,1]{1,0:T(8,128)}', space=vmem, size = 0x1000, scoped, tag = 'scratch operand']
  %s0 = inlined_call_operand.vmem [shape: f32[8,32], index: 0, kind: input, shape index: {}]
  %s1 = inlined_call_operand.vmem [shape: f32[32,8], index: 1, kind: input, shape index: {}]
  %s2 = inlined_call_operand.hbm [shape: f32[1,1,1], index: 2, kind: output, shape index: {}]
  %s3 = sld [smem:[#allocation0]]
  $region38: #{infonce_loss.3} parent=0
    _
  %s5 = ssub.s32 1, %s3
  %s6 = scalar_select 0, %s5, %s3
  $region1: #{infonce_loss.3} parent=0
    #allocation5 [shape = 'u8[512]{0}', space=vmem, size = 0x400, scoped, tag = 'output window, operand 0, single buffered']
    #allocation6 [shape = 's32[1]{0}', space=sflag, size = 0x4, scoped, tag = 'scoped memory for infonce_loss.3']
    %7 = vsyncpa [#allocation6], 0
    // Predicated region
    $region2: #{infonce_loss.3} parent=1 // pred_check
      _
    $region3: #{infonce_loss.3} parent=1 // pred_check_branch
      %9 = sbr.rel (0) target = $region5
    $region4: #{infonce_loss.3} parent=1 // pred_region
      _
    $region5: #{infonce_loss.3} parent=1 // pred_fallthru
      _
    // Predicated region
    $region6: #{infonce_loss.3} parent=1 // pred_check
      _
    $region7: #{infonce_loss.3} parent=1 // pred_check_branch
      %11 = sbr.rel (0) target = $region9
    $region8: #{infonce_loss.3} parent=1 // pred_region
      _
    $region9: #{infonce_loss.3} parent=1 // pred_fallthru
      _
    %s12 = smul.u32 0, 8
    %s13 = smul.u32 0, 8
    %s14 = sadd.s32 %s12, 8
    %s15 = sadd.s32 %s13, 8
    %p16 = scmp.eq.s32.totalorder 0, 0
    // Predicated region
    $region10: #{infonce_loss.3} parent=1 // pred_check
      %p17 = pneg %p16
    $region11: #{infonce_loss.3} parent=1 // pred_check_branch
      %19 = sbr.rel (%p17) target = $region13
    $region12: #{infonce_loss.3} parent=1 // pred_region
      %vm20 = vcmask 7168
      %21 = vst.msk [vmem:[#allocation2] sm:$0xff] %vm20, -1e+30
      %22 = vst.msk [vmem:[#allocation3] sm:$0xff] %vm20, 0.0
      %23 = vst.msk [vmem:[#allocation4] sm:$0xff] %vm20, 0.0
    $region13: #{infonce_loss.3} parent=1 // pred_fallthru
      _
    %v24 = vld [vmem:[%s0] sm:$0xff]
    %v25 = vld [vmem:[%s1] sm:$0xff]
    %v26 = vld [vmem:[%s1 + $0x8] sm:$0xff]
    %v27 = vld [vmem:[%s1 + $0x10] sm:$0xff]
    %v28 = vld [vmem:[%s1 + $0x18] sm:$0xff]
    %vm29 = vcmask 261120
    %v31 = vsel %vm29, %v24, 0
    %33 = vmatprep.subr.mxu0 0.0
    %34 = vmatpush1.msra.mxu0 %v25
    %35 = vmatprep.subr.mxu0 0.0
    %36 = vmatpush1.msra.mxu0 %v26
    %37 = vmatprep.subr.mxu0 0.0
    %38 = vmatpush1.msra.mxu0 %v27
    %39 = vmatprep.subr.mxu0 0.0
    %40 = vmatpush1.msra.mxu0 %v28
    %41 = vmatprep.subr.mxu0 0.0
    %42 = vmatpush1.msra.mxu0 0.0
    %43 = vmatprep.subr.mxu0 0.0
    %44 = vmatpush1.msra.mxu0 0.0
    %45 = vmatprep.subr.mxu0 0.0
    %46 = vmatpush1.msra.mxu0 0.0
    %47 = vmatprep.subr.mxu0 0.0
    %48 = vmatpush1.msra.mxu0 0.0
    %49 = vmatprep.subr.mxu0 0.0
    %50 = vmatpush1.msra.mxu0 0.0
    %51 = vmatprep.subr.mxu0 0.0
    %52 = vmatpush1.msra.mxu0 0.0
    %53 = vmatprep.subr.mxu0 0.0
    %54 = vmatpush1.msra.mxu0 0.0
    %55 = vmatprep.subr.mxu0 0.0
    %56 = vmatpush1.msra.mxu0 0.0
    %57 = vmatprep.subr.mxu0 0.0
    %58 = vmatpush1.msra.mxu0 0.0
    %59 = vmatprep.subr.mxu0 0.0
    %60 = vmatpush1.msra.mxu0 0.0
    %61 = vmatprep.subr.mxu0 0.0
    %62 = vmatpush1.msra.mxu0 0.0
    %63 = vmatprep.subr.mxu0 0.0
    %64 = vmatpush1.msra.mxu0 0.0
    %65 = vmatprep.subr.mxu0 0.0
    %66 = vmatpush1.msra.mxu0 0.0
    %67 = vmatprep.subr.mxu0 0.0
    %68 = vmatpush1.msra.mxu0 0.0
    %69 = vmatprep.subr.mxu0 0.0
    %70 = vmatpush1.msra.mxu0 0.0
    %71 = vmatprep.subr.mxu0 0.0
    %72 = vmatpush1.msra.mxu0 0.0
    %73 = vmatprep.subr.mxu0 0.0
    %74 = vmatpush1.msra.mxu0 0.0
    %75 = vmatprep.subr.mxu0 0.0
    %76 = vmatpush1.msra.mxu0 0.0
    %77 = vmatprep.subr.mxu0 0.0
    %78 = vmatpush1.msra.mxu0 0.0
    %79 = vmatprep.subr.mxu0 0.0
    %80 = vmatpush1.msra.mxu0 0.0
    %81 = vmatprep.subr.mxu0 0.0
    %82 = vmatpush1.msra.mxu0 0.0
    %83 = vmatprep.subr.mxu0 0.0
    %84 = vmatpush1.msra.mxu0 0.0
    %85 = vmatprep.subr.mxu0 0.0
    %86 = vmatpush1.msra.mxu0 0.0
    %87 = vmatprep.subr.mxu0 0.0
    %88 = vmatpush1.msra.mxu0 0.0
    %89 = vmatprep.subr.mxu0 0.0
    %90 = vmatpush1.msra.mxu0 0.0
    %91 = vmatprep.subr.mxu0 0.0
    %92 = vmatpush1.msra.mxu0 0.0
    %93 = vmatprep.subr.mxu0 0.0
    %94 = vmatpush1.msra.mxu0 0.0
    %95 = vmatprep.subr.mxu0 0.0
    %96 = vmatpush1.msra.mxu0 0.0
    %97 = vmatprep.mubr.f32.mxu0 0.0
    %98 = vmatmul.mubr.f32.gmra.mrb[0].mxu0 %v31
    %v99 = vpop.f32.mrb[0].mxu0
    %v100 = vadd.f32 0.0, %v99
    %v101 = vpop.f32.mrb[0].mxu0
    %102 = vdwg.mxu0
    %s103 = sadd.s32 %s12, 4
    %p104 = scmp.lt.s32.totalorder %s14, 4
    %s105 = scalar_select %p104, %s14, 4
    %s106 = sadd.s32 %s105, 4
    %p107 = scmp.lt.s32.totalorder %s12, 4
    %p108 = scmp.lt.s32.totalorder %s103, %s15
    %p109 = pnand %p107, %p108
    %p110 = pneg %p109
    %p111 = scmp.lt.s32.totalorder %s13, %s106
    %p112 = pnand %p110, %p111
    %p113 = pneg %p112
    %p114 = scmp.gt.s32.totalorder %s12, 4
    %s115 = scalar_select %p114, %s12, 4
    %s116 = ssub.s32 %s14, %s115
    %p117 = scmp.lt.s32.totalorder %s115, 0
    %s118 = ssub.s32 0, %s115
    %s119 = scalar_select %p117, %s118, %s115
    %s120 = sand.u32 %s119, 3
    %s121 = ssub.s32 0, %s120
    %s122 = scalar_select %p117, %s121, %s120
    %p123 = scmp.ne.s32.totalorder %s122, 0
    %p124 = scmp.lt.s32.totalorder %s122, 0
    %p125 = pnand %p124, %p123
    %p126 = pneg %p125
    %s127 = sadd.s32 %s122, 4
    %s128 = scalar_select %p126, %s127, %s122
    %s129 = sadd.s32 %s128, %s116
    %p130 = scmp.lt.s32.totalorder %s128, %s15
    %p131 = scmp.lt.s32.totalorder %s129, 4
    %s132 = scalar_select %p131, %s129, 4
    %p133 = scmp.lt.s32.totalorder %s13, %s132
    %p134 = pnand %p130, %p133
    %p135 = pneg %p134
    %p136 = scmp.gt.s32.totalorder %s129, 4
    %s137 = ssub.s32 %s129, 4
    %p138 = scmp.lt.s32.totalorder %s13, %s137
    %p139 = pnand %p136, %p138
    %p140 = pneg %p139
    %p141 = scmp.gt.s32.totalorder %s116, 0
    %p142 = scmp.lt.s32.totalorder %s13, 4
    %p143 = pnand %p141, %p142
    %p144 = pneg %p143
    %p145 = scmp.ge.s32.totalorder %s116, 4
    %p146 = por %p145, %p135
    %p147 = por %p146, %p140
    %p148 = pnand %p144, %p147
    %p149 = pneg %p148
    %p150 = por %p113, %p149
    // Predicated region
    $region14: #{infonce_loss.3} parent=1 // pred_check
      %p151 = pneg %p150
    $region15: #{infonce_loss.3} parent=1 // pred_check_branch
      %153 = sbr.rel (%p151) target = $region17
    $region16: #{infonce_loss.3} parent=1 // pred_region
      %v154 = vlaneseq
      %v155 = vshrl.u32 %v154, 7
      %v156 = vstv %s12
      %v157 = vadd.s32 %v155, %v156
      %v158 = vlaneseq
      %v159 = vand.u32 %v158, 127
      %vm160 = vcmp.lt.s32.totalorder %v157, 4
      %v161 = vadd.s32 %v157, 4
      %vm162 = vcmp.lt.s32.totalorder %v157, 0
      %v163 = vsub.s32 0, %v157
      %v164 = vsel %vm162, %v163, %v157
      %v165 = vshrl.u32 %v164, 2
      %v166 = vand.u32 %v164, 3
      %v167 = vsub.s32 0, %v166
      %v168 = vsel %vm162, %v167, %v166
      %vm169 = vcmp.ne.s32.totalorder %v168, 0
      %vm170 = vcmp.lt.s32.totalorder %v168, 0
      %vm171 = vmand %vm170, %vm169
      %v172 = vadd.s32 %v168, 4
      %v173 = vsel %vm171, %v172, %v168
      %v174 = vsel %vm160, %v161, %v173
      %v175 = vstv %s13
      %v176 = vsub.s32 %v174, %v175
      %vm177 = vcmp.eq.s32.totalorder %v159, %v176
      %v178 = vld [vmem:[#allocation4] sm:$0xff]
      %v179 = vsel %vm177, %v100, 0.0
      %vm180 = vcmask 64512
      %v181 = vsel %vm180, %v179, 0.0
      %182 = vadd.xlane.f32.xlu0 %v181
      %v183 = vpop.xlane.xlu0 %182
      %v184 = vadd.f32 %v178, %v183
      %vm185 = vcmask 7168
      %186 = vst.msk [vmem:[#allocation4] sm:$0xff] %vm185, %v184
    $region17: #{infonce_loss.3} parent=1 // pred_fallthru
      _
    %p187 = scmp.lt.s32.totalorder %s12, %s15
    %p188 = scmp.lt.s32.totalorder %s13, %s14
    %p189 = pnand %p187, %p188
    %p190 = pneg %p189
    // Predicated region
    $region18: #{infonce_loss.3} parent=1 // pred_check
      _
    $region19: #{infonce_loss.3} parent=1 // pred_check_branch
      %192 = sbr.rel (%p189) target = $region21
    $region20: #{infonce_loss.3} parent=1 // pred_region
      %v193 = vlaneseq
      %v194 = vshrl.u32 %v193, 7
      %v195 = vstv %s12
      %v196 = vadd.s32 %v194, %v195
      %v197 = vlaneseq
      %v198 = vand.u32 %v197, 127
      %v199 = vstv %s13
      %v200 = vadd.s32 %v198, %v199
      %vm201 = vcmp.eq.s32.totalorder %v200, %v196
      %v202 = vsel %vm201, -1e+30, %v100
      %vm203 = vcmask 64512
      %v204 = vsel %vm203, %v202, -inf
      %205 = vmax.xlane.f32.xlu0 %v204
      %v206 = vpop.xlane.xlu0 %205
      %v207 = vld [vmem:[#allocation2] sm:$0xff]
      %v208 = vmax.f32 %v207, %v206
      %v209 = vsub.f32 %v207, %v208
      %v210 = vmul.f32 %v209, 1.442695
      %v211 = vpow.pop %v210
      %213 = vset.pattern.permute.xlu0 0
      %214 = vperm.xlu0 %213, %v208
      %v215 = vpop.permute.xlu0 %214
      %v217 = vsub.f32 %v202, %v215
      %v218 = vmul.f32 %v217, 1.442695
      %v219 = vpow.pop %v218
      %v220 = vld [vmem:[#allocation3] sm:$0xff]
      %v221 = vmul.f32 %v211, %v220
      %v222 = vsel %vm203, %v219, 0.0
      %223 = vadd.xlane.f32.xlu0 %v222
      %v224 = vpop.xlane.xlu0 %223
      %v225 = vadd.f32 %v221, %v224
      %vm226 = vcmask 7168
      %227 = vst.msk [vmem:[#allocation3] sm:$0xff] %vm226, %v225
      %228 = vst.msk [vmem:[#allocation2] sm:$0xff] %vm226, %v208
    $region21: #{infonce_loss.3} parent=1 // pred_fallthru
      _
    %p229 = pneg %p190
    // Predicated region
    $region22: #{infonce_loss.3} parent=1 // pred_check
      _
    $region23: #{infonce_loss.3} parent=1 // pred_check_branch
      %231 = sbr.rel (%p190) target = $region25
    $region24: #{infonce_loss.3} parent=1 // pred_region
      %vm232 = vcmask 64512
      %v233 = vsel %vm232, %v100, -inf
      %234 = vmax.xlane.f32.xlu0 %v233
      %v235 = vpop.xlane.xlu0 %234
      %v236 = vld [vmem:[#allocation2] sm:$0xff]
      %v237 = vmax.f32 %v236, %v235
      %v238 = vsub.f32 %v236, %v237
      %v239 = vmul.f32 %v238, 1.442695
      %v240 = vpow.pop %v239
      %242 = vset.pattern.permute.xlu0 0
      %243 = vperm.xlu0 %242, %v237
      %v244 = vpop.permute.xlu0 %243
      %v246 = vsub.f32 %v100, %v244
      %v247 = vmul.f32 %v246, 1.442695
      %v248 = vpow.pop %v247
      %v249 = vld [vmem:[#allocation3] sm:$0xff]
      %v250 = vmul.f32 %v240, %v249
      %v251 = vsel %vm232, %v248, 0.0
      %252 = vadd.xlane.f32.xlu0 %v251
      %v253 = vpop.xlane.xlu0 %252
      %v254 = vadd.f32 %v250, %v253
      %vm255 = vcmask 7168
      %256 = vst.msk [vmem:[#allocation3] sm:$0xff] %vm255, %v254
      %257 = vst.msk [vmem:[#allocation2] sm:$0xff] %vm255, %v237
    $region25: #{infonce_loss.3} parent=1 // pred_fallthru
      _
    // Predicated region
    $region26: #{infonce_loss.3} parent=1 // pred_check
      %p258 = pneg %p16
    $region27: #{infonce_loss.3} parent=1 // pred_check_branch
      %260 = sbr.rel (%p258) target = $region29
    $region28: #{infonce_loss.3} parent=1 // pred_region
      %v261 = vld [vmem:[#allocation2] sm:$0xff]
      %v262 = vld [vmem:[#allocation3] sm:$0xff]
      %v263 = vlog2.pop %v262
      %v264 = vmul.f32 %v263, 0.6931472
      %v265 = vadd.f32 %v261, %v264
      %v266 = vld [vmem:[#allocation4] sm:$0xff]
      %v267 = vsub.f32 %v265, %v266
      %vm268 = vcmask 7168
      %v269 = vsel %vm268, %v267, 0.0
      %v270 = vrot.slane %v269, 4
      %v271 = vadd.f32 %v269, %v270
      %v272 = vrot.slane %v271, 2
      %v273 = vadd.f32 %v271, %v272
      %v274 = vrot.slane %v273, 1
      %v275 = vadd.f32 %v273, %v274
      %vm276 = vcmask 0
      %277 = vst.msk [vmem:[#allocation5] sm:$0x1] %vm276, %v275
    $region29: #{infonce_loss.3} parent=1 // pred_fallthru
      _
    // Predicated region
    $region30: #{infonce_loss.3} parent=1 // pred_check
      _
    $region31: #{infonce_loss.3} parent=1 // pred_check_branch
      %279 = sbr.rel (0) target = $region33
    $region32: #{infonce_loss.3} parent=1 // pred_region
      %s281 = ssub.s32 16, 16
      %282 = vsyncadd [#allocation6], %s281
      %s284 = sshll.u32 [#allocation5], 4
      %s285 = int_to_ptr.vmem [resolvable:$true] %s284
      %287 = dma.vmem_to_hbm [thread:$0]  %s285, 16, %s2, [#allocation6]
    $region33: #{infonce_loss.3} parent=1 // pred_fallthru
      _
    // Predicated region
    $region34: #{infonce_loss.3} parent=1 // pred_check
      _
    $region35: #{infonce_loss.3} parent=1 // pred_check_branch
      %289 = sbr.rel (0) target = $region37
    $region36: #{infonce_loss.3} parent=1 // pred_region
      %290 = dma.done [#allocation6], 16
    $region37: #{infonce_loss.3} parent=1 // pred_fallthru
      _
    %291 = vsyncpa [#allocation6], 1

</llo_original>
